<compile_context>
chip_gen: v7x
topology: tpu7x:2x2x1
jax: 0.10.0
libtpu: 0.0.40
codegen_flags: <defaults>
</compile_context>

<pallas_src>
import functools

import jax
import jax.numpy as jnp
from jax.experimental import pallas as pl
from jax.experimental.pallas import tpu as pltpu

_LANES = 128
_SUBLANES = 8


def _cdiv(a, b):
    return -(-a // b)


def _round_up(a, b):
    return _cdiv(a, b) * b


def _vmem_capacity_bytes():
    # Generation-aware sizing; fall back to the smallest (v7x, 64 MiB/TC).
    try:
        return int(pltpu.get_tpu_info().vmem_capacity_bytes)
    except Exception:
        return 64 * 1024 * 1024


def _dice_bce_kernel(n_valid, steps, n_blocks, tile_rows, needs_mask, has_tail,
                     x_ref, t_ref,
                     pt_ref, p_ref, tsum_ref, bce_ref):
    # x_ref / t_ref: (tile_rows, 128) lane-dense tile of the flattened inputs.
    c = pl.program_id(0)   # parallel chunk axis (megacore on v7x)
    s = pl.program_id(1)   # reduction ("arbitrary") axis

    @pl.when(s == 0)
    def _():
        pt_ref[...] = jnp.zeros_like(pt_ref)
        p_ref[...] = jnp.zeros_like(p_ref)
        tsum_ref[...] = jnp.zeros_like(tsum_ref)
        bce_ref[...] = jnp.zeros_like(bce_ref)

    block = c * steps + s  # intended (un-clamped) block index

    def compute():
        x = x_ref[...].astype(jnp.float32)     # bf16 inputs OK
        t = t_ref[...].astype(jnp.float32)

        p = jax.nn.sigmoid(x)
        # BCEWithLogits applied to z = sigmoid(x) (z >= 0):
        #   max(z,0) - z*t + log1p(exp(-|z|)) == z*(1-t) + log1p(exp(-z))
        bce = p * (1.0 - t) + jnp.log1p(jnp.exp(-p))
        pt = p * t
        pv, tv = p, t

        if needs_mask:
            # Flat index >= n_valid is either lane-tail zero padding or
            # unspecified boundary-block data: select exact zeros (NaN-safe).
            limit = n_valid - block * (tile_rows * _LANES)
            rows = jax.lax.broadcasted_iota(jnp.int32, (tile_rows, _LANES), 0)
            lanes = jax.lax.broadcasted_iota(jnp.int32, (tile_rows, _LANES), 1)
            mask = (rows * _LANES + lanes) < limit
            zero = jnp.float32(0.0)
            pt = jnp.where(mask, pt, zero)
            pv = jnp.where(mask, pv, zero)
            tv = jnp.where(mask, tv, zero)
            bce = jnp.where(mask, bce, zero)

        # Collapse (tile_rows, 128) -> (8, 128) with vreg-wise adds only; the
        # tiny cross-lane collapse happens once outside the kernel.
        def fold(v):
            return jnp.sum(
                v.reshape(tile_rows // _SUBLANES, _SUBLANES, _LANES), axis=0)

        pt_ref[0] += fold(pt)
        p_ref[0] += fold(pv)
        tsum_ref[0] += fold(tv)
        bce_ref[0] += fold(bce)

    if has_tail:
        # Grid is rectangular; the (at most one) surplus step re-reads a valid
        # block (clamped index_map) and is skipped here.
        pl.when(block < n_blocks)(compute)
    else:
        compute()


def dice_bce_loss(logits, targets, smooth=1.0):
    """DiceBCELoss forward. `logits`/`targets`: any matching shape."""
    assert logits.shape == targets.shape
    n = 1
    for d in logits.shape:
        n *= int(d)

    x = logits.reshape(-1)
    t = targets.reshape(-1)
    itemsize = int(x.dtype.itemsize)

    # Pad (copy) ONLY when the element count is not a multiple of 8*128; for
    # the common aligned case the reshape below is free (no HBM traffic).
    n_pad = _round_up(n, _SUBLANES * _LANES)
    if n_pad != n:
        x = jnp.pad(x, (0, n_pad - n))
        t = jnp.pad(t, (0, n_pad - n))
    n_rows = n_pad // _LANES                   # multiple of 8
    x = x.reshape(n_rows, _LANES)
    t = t.reshape(n_rows, _LANES)

    # Block sizing: ~vmem/16 bytes per input block so 2 inputs x 2 pipeline
    # buffers use about a quarter of VMEM (fits v5e/v6e/v7x), capped at 8 MiB.
    vmem = _vmem_capacity_bytes()
    per_block_bytes = max(1 << 20, min(8 << 20, vmem // 16))
    target_rows = max(
        _SUBLANES,
        (per_block_bytes // (_LANES * itemsize)) // _SUBLANES * _SUBLANES)
    tile_rows = min(target_rows, n_rows)       # multiple of 8, <= n_rows

    n_blocks = _cdiv(n_rows, tile_rows)
    # Two "parallel" chunks -> Mosaic can shard across both TensorCores on
    # v7x; harmless (serial loop) on single-TC chips.
    n_chunks = 2 if n_blocks >= 2 else 1
    steps = _cdiv(n_blocks, n_chunks)
    has_tail = (n_chunks * steps) != n_blocks
    needs_mask = (n_blocks * tile_rows * _LANES) > n

    if has_tail:
        def in_map(c, s):
            return (jnp.minimum(c * steps + s, n_blocks - 1), 0)
    else:
        def in_map(c, s):
            return (c * steps + s, 0)

    kernel = functools.partial(
        _dice_bce_kernel, int(n), int(steps), int(n_blocks), int(tile_rows),
        bool(needs_mask), bool(has_tail))

    part_shape = jax.ShapeDtypeStruct((n_chunks, _SUBLANES, _LANES),
                                      jnp.float32)
    vmem_limit = int(2 * 2 * tile_rows * _LANES * itemsize + (8 << 20))

    pt_p, p_p, t_p, bce_p = pl.pallas_call(
        kernel,
        out_shape=(part_shape, part_shape, part_shape, part_shape),
        grid_spec=pltpu.PrefetchScalarGridSpec(
            num_scalar_prefetch=0,
            grid=(n_chunks, steps),
            in_specs=[
                pl.BlockSpec((tile_rows, _LANES), in_map),
                pl.BlockSpec((tile_rows, _LANES), in_map),
            ],
            out_specs=[
                pl.BlockSpec((1, _SUBLANES, _LANES), lambda c, s: (c, 0, 0))
                for _ in range(4)
            ],
        ),
        compiler_params=pltpu.CompilerParams(
            dimension_semantics=("parallel", "arbitrary"),
            vmem_limit_bytes=vmem_limit,
        ),
        cost_estimate=pl.CostEstimate(
            flops=12 * n, transcendentals=3 * n,
            bytes_accessed=2 * n * itemsize),
    )(x, t)

    # Final tiny cross-lane reductions + scalar formula in plain JAX.
    inter = jnp.sum(pt_p)
    p_sum = jnp.sum(p_p)
    t_sum = jnp.sum(t_p)
    bce_mean = jnp.sum(bce_p) / n

    dice = 1.0 - (2.0 * inter + smooth) / (p_sum + t_sum + smooth)
    return bce_mean + dice


def dice_bce_ref(logits, targets, smooth=1.0):
    """Pure-JAX reference mirroring the PyTorch DiceBCELoss module."""
    p = jax.nn.sigmoid(logits.astype(jnp.float32)).reshape(-1)
    t = targets.astype(jnp.float32).reshape(-1)
    inter = jnp.sum(p * t)
    dice = 1.0 - (2.0 * inter + smooth) / (jnp.sum(p) + jnp.sum(t) + smooth)
    z = p  # the module passes the sigmoided values as logits to BCEWithLogits
    bce = jnp.mean(jnp.maximum(z, 0.0) - z * t + jnp.log1p(jnp.exp(-jnp.abs(z))))
    return bce + dice


if __name__ == "__main__":
    key = jax.random.PRNGKey(0)
    k1, k2 = jax.random.split(key)

    B, C, H, W = 2, 4, 16, 16
    logits = jax.random.normal(k1, (B, C, H, W), dtype=jnp.float32)
    targets = (jax.random.uniform(k2, (B, C, H, W)) > 0.5).astype(jnp.float32)

    loss = jax.block_until_ready(dice_bce_loss(logits, targets))
    ref = jax.block_until_ready(dice_bce_ref(logits, targets))

    assert jnp.allclose(loss, ref, rtol=1e-5, atol=1e-5), (loss, ref)
    print("KERNEL_OK")
</pallas_src>

<mosaic_0001>
module attributes {stable_mosaic.version = 11 : i64} {
  func.func @_dice_bce_kernel(%arg0: i32, %arg1: i32, %arg2: memref<16x128xf32, #tpu.memory_space<vmem>>, %arg3: memref<16x128xf32, #tpu.memory_space<vmem>>, %arg4: memref<1x8x128xf32, #tpu.memory_space<vmem>>, %arg5: memref<1x8x128xf32, #tpu.memory_space<vmem>>, %arg6: memref<1x8x128xf32, #tpu.memory_space<vmem>>, %arg7: memref<1x8x128xf32, #tpu.memory_space<vmem>>) attributes {dimension_semantics = [#tpu.dimension_semantics<parallel>, #tpu.dimension_semantics<arbitrary>], iteration_bounds = array<i64: 1, 1>, scalar_prefetch = 0 : i64, scratch_operands = 0 : i64, tpu.core_type = #tpu.core_type<tc>, window_params = [{transform_indices = @transform_0, window_bounds = array<i64: 16, 128>}, {transform_indices = @transform_1, window_bounds = array<i64: 16, 128>}, {transform_indices = @transform_2, window_bounds = array<i64: 1, 8, 128>}, {transform_indices = @transform_3, window_bounds = array<i64: 1, 8, 128>}, {transform_indices = @transform_4, window_bounds = array<i64: 1, 8, 128>}, {transform_indices = @transform_5, window_bounds = array<i64: 1, 8, 128>}]} {
    %c0_i32 = arith.constant 0 : i32
    %0 = arith.cmpi eq, %arg1, %c0_i32 : i32
    %1 = arith.extui %0 : i1 to i32
    %c0_i32_0 = arith.constant 0 : i32
    %2 = arith.cmpi ne, %1, %c0_i32_0 : i32
    scf.if %2 {
      %cst_34 = arith.constant 0.000000e+00 : f32
      %51 = vector.broadcast %cst_34 : f32 to vector<1x8x128xf32>
      %c0_35 = arith.constant 0 : index
      %c0_36 = arith.constant 0 : index
      %c0_37 = arith.constant 0 : index
      %52 = vector.load %arg4[%c0_35, %c0_36, %c0_37] : memref<1x8x128xf32, #tpu.memory_space<vmem>>, vector<1x8x128xf32>
      tpu.vector_store %arg4[%c0_35, %c0_36, %c0_37], %51 {strides = array<i32>} : memref<1x8x128xf32, #tpu.memory_space<vmem>>, vector<1x8x128xf32>,
      %cst_38 = arith.constant 0.000000e+00 : f32
      %53 = vector.broadcast %cst_38 : f32 to vector<1x8x128xf32>
      %c0_39 = arith.constant 0 : index
      %c0_40 = arith.constant 0 : index
      %c0_41 = arith.constant 0 : index
      %54 = vector.load %arg5[%c0_39, %c0_40, %c0_41] : memref<1x8x128xf32, #tpu.memory_space<vmem>>, vector<1x8x128xf32>
      tpu.vector_store %arg5[%c0_39, %c0_40, %c0_41], %53 {strides = array<i32>} : memref<1x8x128xf32, #tpu.memory_space<vmem>>, vector<1x8x128xf32>,
      %cst_42 = arith.constant 0.000000e+00 : f32
      %55 = vector.broadcast %cst_42 : f32 to vector<1x8x128xf32>
      %c0_43 = arith.constant 0 : index
      %c0_44 = arith.constant 0 : index
      %c0_45 = arith.constant 0 : index
      %56 = vector.load %arg6[%c0_43, %c0_44, %c0_45] : memref<1x8x128xf32, #tpu.memory_space<vmem>>, vector<1x8x128xf32>
      tpu.vector_store %arg6[%c0_43, %c0_44, %c0_45], %55 {strides = array<i32>} : memref<1x8x128xf32, #tpu.memory_space<vmem>>, vector<1x8x128xf32>,
      %cst_46 = arith.constant 0.000000e+00 : f32
      %57 = vector.broadcast %cst_46 : f32 to vector<1x8x128xf32>
      %c0_47 = arith.constant 0 : index
      %c0_48 = arith.constant 0 : index
      %c0_49 = arith.constant 0 : index
      %58 = vector.load %arg7[%c0_47, %c0_48, %c0_49] : memref<1x8x128xf32, #tpu.memory_space<vmem>>, vector<1x8x128xf32>
      tpu.vector_store %arg7[%c0_47, %c0_48, %c0_49], %57 {strides = array<i32>} : memref<1x8x128xf32, #tpu.memory_space<vmem>>, vector<1x8x128xf32>,
    } else {
    }
    %c0 = arith.constant 0 : index
    %c0_1 = arith.constant 0 : index
    %3 = vector.load %arg2[%c0, %c0_1] : memref<16x128xf32, #tpu.memory_space<vmem>>, vector<16x128xf32>
    %c0_2 = arith.constant 0 : index
    %c0_3 = arith.constant 0 : index
    %4 = vector.load %arg3[%c0_2, %c0_3] : memref<16x128xf32, #tpu.memory_space<vmem>>, vector<16x128xf32>
    %5 = arith.negf %3 : vector<16x128xf32>
    %6 = math.exp %5 : vector<16x128xf32>
    %cst = arith.constant 1.000000e+00 : f32
    %7 = vector.broadcast %cst : f32 to vector<16x128xf32>
    %8 = arith.addf %7, %6 : vector<16x128xf32>
    %9 = arith.divf %7, %8 : vector<16x128xf32>
    %cst_4 = arith.constant 1.000000e+00 : f32
    %10 = vector.broadcast %cst_4 : f32 to vector<16x128xf32>
    %11 = arith.subf %10, %4 : vector<16x128xf32>
    %12 = arith.mulf %9, %11 : vector<16x128xf32>
    %cst_5 = arith.constant 0.000000e+00 : f32
    %13 = vector.broadcast %cst_5 : f32 to vector<16x128xf32>
    %14 = arith.subf %13, %9 : vector<16x128xf32>
    %15 = math.exp %14 : vector<16x128xf32>
    %16 = math.log1p %15 : vector<16x128xf32>
    %17 = arith.addf %12, %16 : vector<16x128xf32>
    %18 = arith.mulf %9, %4 : vector<16x128xf32>
    %c0_6 = arith.constant 0 : index
    %c0_7 = arith.constant 0 : index
    %c0_8 = arith.constant 0 : index
    %19 = vector.load %arg4[%c0_6, %c0_7, %c0_8] : memref<1x8x128xf32, #tpu.memory_space<vmem>>, vector<1x8x128xf32>
    %20 = vector.shape_cast %19 : vector<1x8x128xf32> to vector<8x128xf32>
    %21 = vector.shape_cast %18 : vector<16x128xf32> to vector<2x8x128xf32>
    %cst_9 = arith.constant dense<0.000000e+00> : vector<8x128xf32>
    %22 = vector.multi_reduction <add>, %21, %cst_9 [0] : vector<2x8x128xf32> to vector<8x128xf32>
    %23 = arith.addf %20, %22 : vector<8x128xf32>
    %c0_10 = arith.constant 0 : index
    %c0_11 = arith.constant 0 : index
    %c0_12 = arith.constant 0 : index
    %24 = vector.load %arg4[%c0_10, %c0_11, %c0_12] : memref<1x8x128xf32, #tpu.memory_space<vmem>>, vector<1x8x128xf32>
    %25 = vector.shape_cast %24 : vector<1x8x128xf32> to vector<8x128xf32>
    %26 = vector.shape_cast %23 : vector<8x128xf32> to vector<1x8x128xf32>
    tpu.vector_store %arg4[%c0_10, %c0_11, %c0_12], %26 {strides = array<i32>} : memref<1x8x128xf32, #tpu.memory_space<vmem>>, vector<1x8x128xf32>,
    %c0_13 = arith.constant 0 : index
    %c0_14 = arith.constant 0 : index
    %c0_15 = arith.constant 0 : index
    %27 = vector.load %arg5[%c0_13, %c0_14, %c0_15] : memref<1x8x128xf32, #tpu.memory_space<vmem>>, vector<1x8x128xf32>
    %28 = vector.shape_cast %27 : vector<1x8x128xf32> to vector<8x128xf32>
    %29 = vector.shape_cast %9 : vector<16x128xf32> to vector<2x8x128xf32>
    %cst_16 = arith.constant dense<0.000000e+00> : vector<8x128xf32>
    %30 = vector.multi_reduction <add>, %29, %cst_16 [0] : vector<2x8x128xf32> to vector<8x128xf32>
    %31 = arith.addf %28, %30 : vector<8x128xf32>
    %c0_17 = arith.constant 0 : index
    %c0_18 = arith.constant 0 : index
    %c0_19 = arith.constant 0 : index
    %32 = vector.load %arg5[%c0_17, %c0_18, %c0_19] : memref<1x8x128xf32, #tpu.memory_space<vmem>>, vector<1x8x128xf32>
    %33 = vector.shape_cast %32 : vector<1x8x128xf32> to vector<8x128xf32>
    %34 = vector.shape_cast %31 : vector<8x128xf32> to vector<1x8x128xf32>
    tpu.vector_store %arg5[%c0_17, %c0_18, %c0_19], %34 {strides = array<i32>} : memref<1x8x128xf32, #tpu.memory_space<vmem>>, vector<1x8x128xf32>,
    %c0_20 = arith.constant 0 : index
    %c0_21 = arith.constant 0 : index
    %c0_22 = arith.constant 0 : index
    %35 = vector.load %arg6[%c0_20, %c0_21, %c0_22] : memref<1x8x128xf32, #tpu.memory_space<vmem>>, vector<1x8x128xf32>
    %36 = vector.shape_cast %35 : vector<1x8x128xf32> to vector<8x128xf32>
    %37 = vector.shape_cast %4 : vector<16x128xf32> to vector<2x8x128xf32>
    %cst_23 = arith.constant dense<0.000000e+00> : vector<8x128xf32>
    %38 = vector.multi_reduction <add>, %37, %cst_23 [0] : vector<2x8x128xf32> to vector<8x128xf32>
    %39 = arith.addf %36, %38 : vector<8x128xf32>
    %c0_24 = arith.constant 0 : index
    %c0_25 = arith.constant 0 : index
    %c0_26 = arith.constant 0 : index
    %40 = vector.load %arg6[%c0_24, %c0_25, %c0_26] : memref<1x8x128xf32, #tpu.memory_space<vmem>>, vector<1x8x128xf32>
    %41 = vector.shape_cast %40 : vector<1x8x128xf32> to vector<8x128xf32>
    %42 = vector.shape_cast %39 : vector<8x128xf32> to vector<1x8x128xf32>
    tpu.vector_store %arg6[%c0_24, %c0_25, %c0_26], %42 {strides = array<i32>} : memref<1x8x128xf32, #tpu.memory_space<vmem>>, vector<1x8x128xf32>,
    %c0_27 = arith.constant 0 : index
    %c0_28 = arith.constant 0 : index
    %c0_29 = arith.constant 0 : index
    %43 = vector.load %arg7[%c0_27, %c0_28, %c0_29] : memref<1x8x128xf32, #tpu.memory_space<vmem>>, vector<1x8x128xf32>
    %44 = vector.shape_cast %43 : vector<1x8x128xf32> to vector<8x128xf32>
    %45 = vector.shape_cast %17 : vector<16x128xf32> to vector<2x8x128xf32>
    %cst_30 = arith.constant dense<0.000000e+00> : vector<8x128xf32>
    %46 = vector.multi_reduction <add>, %45, %cst_30 [0] : vector<2x8x128xf32> to vector<8x128xf32>
    %47 = arith.addf %44, %46 : vector<8x128xf32>
    %c0_31 = arith.constant 0 : index
    %c0_32 = arith.constant 0 : index
    %c0_33 = arith.constant 0 : index
    %48 = vector.load %arg7[%c0_31, %c0_32, %c0_33] : memref<1x8x128xf32, #tpu.memory_space<vmem>>, vector<1x8x128xf32>
    %49 = vector.shape_cast %48 : vector<1x8x128xf32> to vector<8x128xf32>
    %50 = vector.shape_cast %47 : vector<8x128xf32> to vector<1x8x128xf32>
    tpu.vector_store %arg7[%c0_31, %c0_32, %c0_33], %50 {strides = array<i32>} : memref<1x8x128xf32, #tpu.memory_space<vmem>>, vector<1x8x128xf32>,
    return
  }
  func.func @transform_0(%arg0: i32, %arg1: i32) -> (i32, i32) {
    %c1_i32 = arith.constant 1 : i32
    %0 = arith.muli %arg0, %c1_i32 : i32
    %1 = arith.addi %0, %arg1 : i32
    %c0_i32 = arith.constant 0 : i32
    %c0_i32_0 = arith.constant 0 : i32
    return %1, %c0_i32 : i32, i32
  }
  func.func @transform_1(%arg0: i32, %arg1: i32) -> (i32, i32) {
    %c1_i32 = arith.constant 1 : i32
    %0 = arith.muli %arg0, %c1_i32 : i32
    %1 = arith.addi %0, %arg1 : i32
    %c0_i32 = arith.constant 0 : i32
    %c0_i32_0 = arith.constant 0 : i32
    return %1, %c0_i32 : i32, i32
  }
  func.func @transform_2(%arg0: i32, %arg1: i32) -> (i32, i32, i32) {
    %c0_i32 = arith.constant 0 : i32
    %c0_i32_0 = arith.constant 0 : i32
    %c0_i32_1 = arith.constant 0 : i32
    return %arg0, %c0_i32, %c0_i32_0 : i32, i32, i32
  }
  func.func @transform_3(%arg0: i32, %arg1: i32) -> (i32, i32, i32) {
    %c0_i32 = arith.constant 0 : i32
    %c0_i32_0 = arith.constant 0 : i32
    %c0_i32_1 = arith.constant 0 : i32
    return %arg0, %c0_i32, %c0_i32_0 : i32, i32, i32
  }
  func.func @transform_4(%arg0: i32, %arg1: i32) -> (i32, i32, i32) {
    %c0_i32 = arith.constant 0 : i32
    %c0_i32_0 = arith.constant 0 : i32
    %c0_i32_1 = arith.constant 0 : i32
    return %arg0, %c0_i32, %c0_i32_0 : i32, i32, i32
  }
  func.func @transform_5(%arg0: i32, %arg1: i32) -> (i32, i32, i32) {
    %c0_i32 = arith.constant 0 : i32
    %c0_i32_0 = arith.constant 0 : i32
    %c0_i32_1 = arith.constant 0 : i32
    return %arg0, %c0_i32, %c0_i32_0 : i32, i32, i32
  }
}

</mosaic_0001>

<llo_original>
// kernel: tpu_custom_call.1
$region0: #{tpu_custom_call.1}
  #allocation0 [shape = 'u32[]', space=smem, size = 0x4, offset = 0x4, fixed_abs, tag = 'smem constant byte address 0x4 - core index']
  #allocation1 [shape = 'u32[144,128]{1,0:T(1,128)}', space=vmem, size = 0x12000, scoped, tag = 'internal scratch']
  %s0 = inlined_call_operand.hbm [shape: f32[16,128], index: 0, kind: input, shape index: {}]
  %s1 = inlined_call_operand.hbm [shape: f32[16,128], index: 1, kind: input, shape index: {}]
  %s2 = inlined_call_operand.hbm [shape: f32[1,8,128], index: 2, kind: output, shape index: {0}]
  %s3 = inlined_call_operand.hbm [shape: f32[1,8,128], index: 3, kind: output, shape index: {1}]
  %s4 = inlined_call_operand.hbm [shape: f32[1,8,128], index: 4, kind: output, shape index: {2}]
  %s5 = inlined_call_operand.hbm [shape: f32[1,8,128], index: 5, kind: output, shape index: {3}]
  %6 = xla_tuple %s2, %s3, %s4, %s5
  %s7 = sld [smem:[#allocation0]]
  $region54: #{tpu_custom_call.1} parent=0
    _
  %s9 = ssub.s32 1, %s7
  %s10 = scalar_select 0, %s9, %s7
  $region1: #{tpu_custom_call.1} parent=0
    #allocation2 [shape = 'u8[8192]{0}', space=vmem, size = 0x2000, scoped, tag = 'input window, operand 0, single buffered']
    #allocation3 [shape = 's32[1]{0}', space=sflag, size = 0x4, scoped, tag = 'scoped memory for tpu_custom_call.1']
    #allocation4 [shape = 's32[1]{0}', space=sflag, size = 0x4, scoped, tag = 'scoped memory for tpu_custom_call.1']
    #allocation5 [shape = 'u8[8192]{0}', space=vmem, size = 0x2000, scoped, tag = 'input window, operand 1, single buffered']
    #allocation6 [shape = 's32[1]{0}', space=sflag, size = 0x4, scoped, tag = 'scoped memory for tpu_custom_call.1']
    #allocation7 [shape = 'u8[4096]{0}', space=vmem, size = 0x1000, scoped, tag = 'output window, operand 0, single buffered']
    #allocation8 [shape = 'u8[4096]{0}', space=vmem, size = 0x1000, scoped, tag = 'output window, operand 1, single buffered']
    #allocation9 [shape = 's32[1]{0}', space=sflag, size = 0x4, scoped, tag = 'scoped memory for tpu_custom_call.1']
    #allocation10 [shape = 'u8[4096]{0}', space=vmem, size = 0x1000, scoped, tag = 'output window, operand 2, single buffered']
    #allocation11 [shape = 'u8[4096]{0}', space=vmem, size = 0x1000, scoped, tag = 'output window, operand 3, single buffered']
    #allocation12 [shape = 's32[1]{0}', space=sflag, size = 0x4, scoped, tag = 'scoped memory for tpu_custom_call.1']
    %11 = vsyncpa [#allocation3], 0
    %12 = vsyncpa [#allocation6], 0
    %13 = vsyncpa [#allocation4], 0
    %14 = vsyncpa [#allocation9], 0
    %15 = vsyncpa [#allocation12], 0
    // Predicated region
    $region2: #{tpu_custom_call.1} parent=1 // pred_check
      _
    $region3: #{tpu_custom_call.1} parent=1 // pred_check_branch
      %17 = sbr.rel (0) target = $region5
    $region4: #{tpu_custom_call.1} parent=1 // pred_region
      %s18 = sadd.s32 0, 0
      %s19 = smul.u32 2, %s18
      %s21 = ssub.s32 256, 256
      %22 = vsyncadd [#allocation3], %s21
      %s23 = smul.addr %s19, 128
      %s24 = scalar_lea.hbm %s0, %s23
      %s25 = sshll.u32 [#allocation2], 4
      %s26 = int_to_ptr.vmem [resolvable:$true] %s25
      %31 = dma.hbm_to_vmem [thread:$0]  %s24, 256, %s26, [#allocation3], 128, 128, 8
    $region5: #{tpu_custom_call.1} parent=1 // pred_fallthru
      _
    // Predicated region
    $region6: #{tpu_custom_call.1} parent=1 // pred_check
      _
    $region7: #{tpu_custom_call.1} parent=1 // pred_check_branch
      %33 = sbr.rel (0) target = $region9
    $region8: #{tpu_custom_call.1} parent=1 // pred_region
      %s34 = sadd.s32 0, 0
      %s35 = smul.u32 2, %s34
      %s37 = ssub.s32 256, 256
      %38 = vsyncadd [#allocation6], %s37
      %s39 = smul.addr %s35, 128
      %s40 = scalar_lea.hbm %s1, %s39
      %s41 = sshll.u32 [#allocation5], 4
      %s42 = int_to_ptr.vmem [resolvable:$true] %s41
      %47 = dma.hbm_to_vmem [thread:$0]  %s40, 256, %s42, [#allocation6], 128, 128, 8
    $region9: #{tpu_custom_call.1} parent=1 // pred_fallthru
      _
    // Predicated region
    $region10: #{tpu_custom_call.1} parent=1 // pred_check
      _
    $region11: #{tpu_custom_call.1} parent=1 // pred_check_branch
      %49 = sbr.rel (0) target = $region13
    $region12: #{tpu_custom_call.1} parent=1 // pred_region
      %50 = dma.done [#allocation3], 256
    $region13: #{tpu_custom_call.1} parent=1 // pred_fallthru
      _
    // Predicated region
    $region14: #{tpu_custom_call.1} parent=1 // pred_check
      _
    $region15: #{tpu_custom_call.1} parent=1 // pred_check_branch
      %52 = sbr.rel (0) target = $region17
    $region16: #{tpu_custom_call.1} parent=1 // pred_region
      %53 = dma.done [#allocation6], 256
    $region17: #{tpu_custom_call.1} parent=1 // pred_fallthru
      _
    %s54 = sadd.s32 0, 0
    %s55 = smul.u32 2, %s54
    %s56 = sadd.s32 0, 0
    %s57 = smul.u32 2, %s56
    %p58 = scmp.eq.s32.totalorder 0, 0
    // Predicated region
    $region18: #{tpu_custom_call.1} parent=1 // pred_check
      %p59 = pneg %p58
    $region19: #{tpu_custom_call.1} parent=1 // pred_check_branch
      %61 = sbr.rel (%p59) target = $region21
    $region20: #{tpu_custom_call.1} parent=1 // pred_region
      %62 = vst [vmem:[#allocation7] sm:$0xff] 0.0
      %63 = vst [vmem:[#allocation8] sm:$0xff] 0.0
      %64 = vst [vmem:[#allocation10] sm:$0xff] 0.0
      %65 = vst [vmem:[#allocation11] sm:$0xff] 0.0
    $region21: #{tpu_custom_call.1} parent=1 // pred_fallthru
      _
    %v66 = vld [vmem:[#allocation2] sm:$0xff]
    %v67 = vld [vmem:[#allocation2 + $0x8] sm:$0xff]
    %v68 = vld [vmem:[#allocation5] sm:$0xff]
    %v69 = vld [vmem:[#allocation5 + $0x8] sm:$0xff]
    %v70 = vxor.u32 %v66, 2147483648
    %v71 = vxor.u32 %v67, 2147483648
    %v72 = vmul.f32 %v70, 1.442695
    %v73 = vpow.pop %v72
    %v74 = vmul.f32 %v71, 1.442695
    %v75 = vpow.pop %v74
    %v76 = vadd.f32 %v73, 1.0
    %v77 = vadd.f32 %v75, 1.0
    %v78 = vrcp.pop %v76
    %v79 = vmul.f32 1.0, %v78
    %v80 = vrcp.pop %v77
    %v81 = vmul.f32 1.0, %v80
    %v82 = vsub.f32 1.0, %v68
    %v83 = vsub.f32 1.0, %v69
    %v84 = vmul.f32 %v79, %v82
    %v85 = vmul.f32 %v81, %v83
    %v86 = vsub.f32 0.0, %v79
    %v87 = vsub.f32 0.0, %v81
    %v88 = vmul.f32 %v86, 1.442695
    %v89 = vpow.pop %v88
    %v90 = vmul.f32 %v87, 1.442695
    %v91 = vpow.pop %v90
    %v92 = vadd.f32 %v89, 1.0
    %v93 = vlog2.pop %v92
    %v94 = vmul.f32 %v93, 0.6931472
    %v95 = vmul.f32 -0.5, %v89
    %v96 = vadd.f32 %v95, 1.0
    %v97 = vmul.f32 %v96, %v89
    %v98 = vand.u32 2147483647, %v89
    %vm99 = vcmp.lt.f32.partialorder %v98, 0.0004427343
    %v100 = vsel %vm99, %v97, %v94
    %v101 = vadd.f32 %v91, 1.0
    %v102 = vlog2.pop %v101
    %v103 = vmul.f32 %v102, 0.6931472
    %v104 = vmul.f32 -0.5, %v91
    %v105 = vadd.f32 %v104, 1.0
    %v106 = vmul.f32 %v105, %v91
    %v107 = vand.u32 2147483647, %v91
    %vm108 = vcmp.lt.f32.partialorder %v107, 0.0004427343
    %v109 = vsel %vm108, %v106, %v103
    %v110 = vadd.f32 %v84, %v100
    %v111 = vadd.f32 %v85, %v109
    %v112 = vmul.f32 %v79, %v68
    %v113 = vmul.f32 %v81, %v69
    %v114 = vld [vmem:[#allocation7] sm:$0xff]
    %v115 = vadd.f32 %v112, %v113
    %v116 = vadd.f32 %v114, %v115
    %117 = vst [vmem:[#allocation7] sm:$0xff] %v116
    %v118 = vld [vmem:[#allocation8] sm:$0xff]
    %v119 = vadd.f32 %v79, %v81
    %v120 = vadd.f32 %v118, %v119
    %121 = vst [vmem:[#allocation8] sm:$0xff] %v120
    %v122 = vld [vmem:[#allocation10] sm:$0xff]
    %v123 = vadd.f32 %v68, %v69
    %v124 = vadd.f32 %v122, %v123
    %125 = vst [vmem:[#allocation10] sm:$0xff] %v124
    %v126 = vld [vmem:[#allocation11] sm:$0xff]
    %v127 = vadd.f32 %v110, %v111
    %v128 = vadd.f32 %v126, %v127
    %129 = vst [vmem:[#allocation11] sm:$0xff] %v128
    // Predicated region
    $region22: #{tpu_custom_call.1} parent=1 // pred_check
      _
    $region23: #{tpu_custom_call.1} parent=1 // pred_check_branch
      %131 = sbr.rel (0) target = $region25
    $region24: #{tpu_custom_call.1} parent=1 // pred_region
      %s133 = ssub.s32 128, 128
      %134 = vsyncadd [#allocation4], %s133
      %s136 = sshll.u32 [#allocation7], 4
      %s137 = int_to_ptr.vmem [resolvable:$true] %s136
      %139 = dma.vmem_to_hbm [thread:$0]  %s137, 128, %s2, [#allocation4]
    $region25: #{tpu_custom_call.1} parent=1 // pred_fallthru
      _
    // Predicated region
    $region26: #{tpu_custom_call.1} parent=1 // pred_check
      _
    $region27: #{tpu_custom_call.1} parent=1 // pred_check_branch
      %141 = sbr.rel (0) target = $region29
    $region28: #{tpu_custom_call.1} parent=1 // pred_region
      %s143 = ssub.s32 128, 128
      %144 = vsyncadd [#allocation9], %s143
      %s146 = sshll.u32 [#allocation8], 4
      %s147 = int_to_ptr.vmem [resolvable:$true] %s146
      %149 = dma.vmem_to_hbm [thread:$0]  %s147, 128, %s3, [#allocation9]
    $region29: #{tpu_custom_call.1} parent=1 // pred_fallthru
      _
    // Predicated region
    $region30: #{tpu_custom_call.1} parent=1 // pred_check
      _
    $region31: #{tpu_custom_call.1} parent=1 // pred_check_branch
      %151 = sbr.rel (0) target = $region33
    $region32: #{tpu_custom_call.1} parent=1 // pred_region
      %s153 = ssub.s32 128, 128
      %154 = vsyncadd [#allocation9], %s153
      %s156 = sshll.u32 [#allocation10], 4
      %s157 = int_to_ptr.vmem [resolvable:$true] %s156
      %159 = dma.vmem_to_hbm [thread:$0]  %s157, 128, %s4, [#allocation9]
    $region33: #{tpu_custom_call.1} parent=1 // pred_fallthru
      _
    // Predicated region
    $region34: #{tpu_custom_call.1} parent=1 // pred_check
      _
    $region35: #{tpu_custom_call.1} parent=1 // pred_check_branch
      %161 = sbr.rel (0) target = $region37
    $region36: #{tpu_custom_call.1} parent=1 // pred_region
      %s163 = ssub.s32 128, 128
      %164 = vsyncadd [#allocation12], %s163
      %s166 = sshll.u32 [#allocation11], 4
      %s167 = int_to_ptr.vmem [resolvable:$true] %s166
      %169 = dma.vmem_to_hbm [thread:$0]  %s167, 128, %s5, [#allocation12]
    $region37: #{tpu_custom_call.1} parent=1 // pred_fallthru
      _
    // Predicated region
    $region38: #{tpu_custom_call.1} parent=1 // pred_check
      _
    $region39: #{tpu_custom_call.1} parent=1 // pred_check_branch
      %171 = sbr.rel (0) target = $region41
    $region40: #{tpu_custom_call.1} parent=1 // pred_region
      %172 = dma.done [#allocation4], 128
    $region41: #{tpu_custom_call.1} parent=1 // pred_fallthru
      _
    // Predicated region
    $region42: #{tpu_custom_call.1} parent=1 // pred_check
      _
    $region43: #{tpu_custom_call.1} parent=1 // pred_check_branch
      %174 = sbr.rel (0) target = $region45
    $region44: #{tpu_custom_call.1} parent=1 // pred_region
      %175 = dma.done [#allocation9], 128
    $region45: #{tpu_custom_call.1} parent=1 // pred_fallthru
      _
    // Predicated region
    $region46: #{tpu_custom_call.1} parent=1 // pred_check
      _
    $region47: #{tpu_custom_call.1} parent=1 // pred_check_branch
      %177 = sbr.rel (0) target = $region49
    $region48: #{tpu_custom_call.1} parent=1 // pred_region
      %178 = dma.done [#allocation9], 128
    $region49: #{tpu_custom_call.1} parent=1 // pred_fallthru
      _
    // Predicated region
    $region50: #{tpu_custom_call.1} parent=1 // pred_check
      _
    $region51: #{tpu_custom_call.1} parent=1 // pred_check_branch
      %180 = sbr.rel (0) target = $region53
    $region52: #{tpu_custom_call.1} parent=1 // pred_region
      %181 = dma.done [#allocation12], 128
    $region53: #{tpu_custom_call.1} parent=1 // pred_fallthru
      _
    %182 = vsyncpa [#allocation3], 1
    %183 = vsyncpa [#allocation6], 1
    %184 = vsyncpa [#allocation4], 1
    %185 = vsyncpa [#allocation9], 1
    %186 = vsyncpa [#allocation12], 1

</llo_original>
